<compile_context>
chip_gen: v5e
topology: v5e:2x2
jax: 0.10.0
libtpu: 0.0.40
codegen_flags: <defaults>
</compile_context>

<pallas_src>
import math
import jax
import jax.numpy as jnp
from jax.experimental import pallas as pl
from jax.experimental.pallas import tpu as pltpu

# ---------------- model dims (small, deterministic) ----------------
B = 2          # batch
S = 8          # sequence length
D = 32         # d_model (== EncoderLayer.size)
H = 4          # attention heads
DK = D // H    # per-head dim
DFF = 64       # feed-forward hidden
EPS = 1e-6
NEG_INF = -1e9

WROWS = D + 8          # per-head weight rows: D weight rows + bias row + zero pad
VECW = DFF             # width of the packed small-vector slab

# rows of the packed small-vector slab
_LN1_A, _LN1_B, _BO, _LN2_A, _LN2_B, _B1, _B2 = range(7)


def _layer_norm(v, a, b):
    # v: (S, D); a, b: (1, D).  torch.std is unbiased (N-1); eps added to std.
    mean = jnp.mean(v, axis=-1, keepdims=True)
    var = jnp.sum((v - mean) ** 2, axis=-1, keepdims=True) * (1.0 / (D - 1))
    std = jnp.sqrt(var)
    # exact divide kept for bit-accuracy vs. torch; at realistic row counts switch
    # to `* pl.reciprocal(std + EPS, approx=True)` to move the divide to the EUP.
    return a * (v - mean) / (std + EPS) + b


def encoder_layer_kernel(dyn_ref, wqkvh_ref, woh_ref, wff_ref, vec_ref, o_ref):
    # ---- per-batch dynamic slab: rows 0:S = x, row S = key mask (as f32) ----
    dyn = dyn_ref[0]                      # (2S, D)
    x = dyn[0:S, :]                       # (S, D)
    mrow = dyn[S:S + 1, 0:S]              # (1, S)  nonzero -> attend

    vec = vec_ref[...]                    # (8, DFF) packed small vectors
    ln1_a = vec[_LN1_A:_LN1_A + 1, :D]
    ln1_b = vec[_LN1_B:_LN1_B + 1, :D]
    bo    = vec[_BO:_BO + 1, :D]
    ln2_a = vec[_LN2_A:_LN2_A + 1, :D]
    ln2_b = vec[_LN2_B:_LN2_B + 1, :D]
    b1    = vec[_B1:_B1 + 1, :DFF]
    b2    = vec[_B2:_B2 + 1, :D]

    # key-padding mask -> additive bias, computed once, shared by all heads/queries
    key_bias = jnp.where(mrow != 0.0, 0.0, NEG_INF)        # (1, S)

    # ---- sublayer 0: x + self_attn(LayerNorm(x)) ----
    xn = _layer_norm(x, ln1_a, ln1_b)                       # (S, D)
    xnb = jnp.broadcast_to(xn[None, :, :], (H, S, D))       # hoisted once, reused 3x

    def proj(j):
        # weights are pre-split per head in the wrapper; bias folded in at row D.
        wfull = wqkvh_ref[j]                                # (H, WROWS, DK)
        w = wfull[:, 0:D, :]                                # (H, D, DK)
        b = wfull[:, D:D + 1, :]                            # (H, 1, DK)
        return jnp.einsum("hnd,hdk->hnk", xnb, w,
                          preferred_element_type=jnp.float32) + b

    qh = proj(0)                                            # (H, S, DK)
    kh = proj(1)
    vh = proj(2)

    scores = jnp.einsum("hqc,hkc->hqk", qh, kh,
                        preferred_element_type=jnp.float32) * (1.0 / math.sqrt(DK))
    scores = scores + key_bias[None, :, :]                  # (H, S, S)

    # online-softmax style, normalization deferred until after the PV matmul
    m = jnp.max(scores, axis=-1, keepdims=True)
    e = jnp.exp(scores - m)
    denom = jnp.sum(e, axis=-1, keepdims=True)              # (H, S, 1)
    ctx = jnp.einsum("hqk,hkd->hqd", e, vh,
                     preferred_element_type=jnp.float32)    # (H, S, DK)
    ctx = ctx * pl.reciprocal(denom, approx=True)           # divide -> EUP slot

    # output projection: one batched MXU contraction over DK, then a cheap
    # major-axis reduce over heads (no lane-axis concat of head outputs).
    attn = jnp.einsum("hqd,hdo->hqo", ctx, woh_ref[...],
                      preferred_element_type=jnp.float32)   # (H, S, D)
    attn_out = jnp.sum(attn, axis=0) + bo                   # (S, D)

    x1 = x + attn_out

    # ---- sublayer 1: x1 + feed_forward(LayerNorm(x1)) ----
    xn2 = _layer_norm(x1, ln2_a, ln2_b)
    w1 = wff_ref[0:D, :]                                    # (D, DFF)
    w2 = wff_ref[D:D + DFF, 0:D]                            # (DFF, D)
    hidden = jnp.maximum(
        jnp.dot(xn2, w1, preferred_element_type=jnp.float32) + b1, 0.0)
    ff = jnp.dot(hidden, w2, preferred_element_type=jnp.float32) + b2

    o_ref[...] = (x1 + ff)[None, :, :].astype(o_ref.dtype)


def encoder_layer(x, mask, p):
    """x: (B, S, D) f32; mask: (B, 1, S) int (0 = masked); p: dict of weights."""
    # per-batch dynamic slab: rows 0:S = x, row S = key mask
    dyn = jnp.zeros((B, 2 * S, D), jnp.float32)
    dyn = dyn.at[:, 0:S, :].set(x.astype(jnp.float32))
    dyn = dyn.at[:, S, 0:S].set(mask.reshape(B, S).astype(jnp.float32))

    # per-head q/k/v projection weights, bias folded in as row D (rows D+1.. zero)
    def head_wb(wm, bv):
        w_h = wm.reshape(D, H, DK).transpose(1, 0, 2)        # (H, D, DK)
        b_h = bv.reshape(H, DK)[:, None, :]                  # (H, 1, DK)
        pad = jnp.zeros((H, WROWS - D - 1, DK), jnp.float32)
        return jnp.concatenate([w_h, b_h, pad], axis=1)      # (H, WROWS, DK)

    wqkvh = jnp.stack([head_wb(p["wq"], p["bq"]),
                       head_wb(p["wk"], p["bk"]),
                       head_wb(p["wv"], p["bv"])], axis=0)   # (3, H, WROWS, DK)

    woh = p["wo"].reshape(H, DK, D)                          # (H, DK, D)

    # w1 (D,DFF) stacked over lane-padded w2 (DFF,D) -> one (D+DFF, DFF) slab
    w2p = jnp.pad(p["w2"], ((0, 0), (0, DFF - D)))
    wff = jnp.concatenate([p["w1"], w2p], axis=0)            # (D+DFF, DFF)

    def _row(v):
        v = v.reshape(1, -1).astype(jnp.float32)
        return jnp.pad(v, ((0, 0), (0, VECW - v.shape[1])))

    vec = jnp.concatenate([
        _row(p["ln1_a"]), _row(p["ln1_b"]), _row(p["bo"]),
        _row(p["ln2_a"]), _row(p["ln2_b"]),
        _row(p["b1"]), _row(p["b2"]),
        jnp.zeros((1, VECW), jnp.float32),
    ], axis=0)                                               # (8, VECW)

    grid_spec = pltpu.PrefetchScalarGridSpec(
        num_scalar_prefetch=0,
        grid=(B,),
        in_specs=[
            pl.BlockSpec((1, 2 * S, D), lambda b: (b, 0, 0)),        # dyn (per batch)
            pl.BlockSpec((3, H, WROWS, DK), lambda b: (0, 0, 0, 0)), # qkv weights
            pl.BlockSpec((H, DK, D), lambda b: (0, 0, 0)),           # wo per head
            pl.BlockSpec((D + DFF, DFF), lambda b: (0, 0)),          # w1|w2 slab
            pl.BlockSpec((8, VECW), lambda b: (0, 0)),               # small vectors
        ],
        out_specs=pl.BlockSpec((1, S, D), lambda b: (b, 0, 0)),
    )

    out = pl.pallas_call(
        encoder_layer_kernel,
        out_shape=jax.ShapeDtypeStruct((B, S, D), jnp.float32),
        grid_spec=grid_spec,
        compiler_params=pltpu.CompilerParams(
            dimension_semantics=("parallel",)),   # megacore sharding on v7x
    )(dyn, wqkvh, woh, wff, vec)
    return out


# ---------------- pure-JAX reference (sanity check) ----------------
def encoder_layer_ref(x, mask, p):
    def ln(v, a, b):
        mean = jnp.mean(v, axis=-1, keepdims=True)
        var = jnp.sum((v - mean) ** 2, axis=-1, keepdims=True) / (D - 1)
        return a * (v - mean) / (jnp.sqrt(var) + EPS) + b

    xn = ln(x, p["ln1_a"], p["ln1_b"])
    q = xn @ p["wq"] + p["bq"]
    k = xn @ p["wk"] + p["bk"]
    v = xn @ p["wv"] + p["bv"]

    def split_heads(t):  # (B,S,D) -> (B,H,S,DK)
        return t.reshape(B, S, H, DK).transpose(0, 2, 1, 3)

    qh, kh, vh = split_heads(q), split_heads(k), split_heads(v)
    scores = jnp.einsum("bhqd,bhkd->bhqk", qh, kh) / math.sqrt(DK)
    scores = jnp.where(mask[:, None, :, :] == 0, -1e9, scores)
    pattn = jax.nn.softmax(scores, axis=-1)
    attn = jnp.einsum("bhqk,bhkd->bhqd", pattn, vh).transpose(0, 2, 1, 3).reshape(B, S, D)
    attn = attn @ p["wo"] + p["bo"]
    x1 = x + attn

    xn2 = ln(x1, p["ln2_a"], p["ln2_b"])
    ff = jnp.maximum(xn2 @ p["w1"] + p["b1"], 0.0) @ p["w2"] + p["b2"]
    return x1 + ff


def make_params(key):
    ks = jax.random.split(key, 10)
    scale = 0.1
    return {
        "ln1_a": jnp.ones((1, D), jnp.float32),
        "ln1_b": jnp.zeros((1, D), jnp.float32),
        "wq": scale * jax.random.normal(ks[0], (D, D), jnp.float32),
        "bq": scale * jax.random.normal(ks[1], (1, D), jnp.float32),
        "wk": scale * jax.random.normal(ks[2], (D, D), jnp.float32),
        "bk": scale * jax.random.normal(ks[3], (1, D), jnp.float32),
        "wv": scale * jax.random.normal(ks[4], (D, D), jnp.float32),
        "bv": scale * jax.random.normal(ks[5], (1, D), jnp.float32),
        "wo": scale * jax.random.normal(ks[6], (D, D), jnp.float32),
        "bo": scale * jax.random.normal(ks[7], (1, D), jnp.float32),
        "ln2_a": jnp.ones((1, D), jnp.float32),
        "ln2_b": jnp.zeros((1, D), jnp.float32),
        "w1": scale * jax.random.normal(ks[8], (D, DFF), jnp.float32),
        "b1": jnp.zeros((1, DFF), jnp.float32),
        "w2": scale * jax.random.normal(ks[9], (DFF, D), jnp.float32),
        "b2": jnp.zeros((1, D), jnp.float32),
    }


if __name__ == "__main__":
    key = jax.random.PRNGKey(0)
    kx, kp = jax.random.split(key)

    x = jax.random.normal(kx, (B, S, D), jnp.float32)
    # mask: last two positions of each sequence are masked out (== 0)
    mask = jnp.ones((B, 1, S), jnp.int32).at[:, :, -2:].set(0)
    params = make_params(kp)

    out = jax.block_until_ready(encoder_layer(x, mask, params))
    ref = encoder_layer_ref(x, mask, params)

    assert out.shape == (B, S, D)
    # small slack for the intentional approx (EUP) reciprocal in the softmax
    # normalization; everything else is exact f32.
    assert jnp.allclose(out, ref, atol=2e-3, rtol=2e-3), "mismatch vs reference"

    print("KERNEL_OK")
</pallas_src>

<mosaic_0001>
module attributes {stable_mosaic.version = 11 : i64} {
  func.func @encoder_layer_kernel(%arg0: i32, %arg1: memref<1x16x32xf32, #tpu.memory_space<vmem>>, %arg2: memref<3x4x40x8xf32, #tpu.memory_space<vmem>>, %arg3: memref<4x8x32xf32, #tpu.memory_space<vmem>>, %arg4: memref<96x64xf32, #tpu.memory_space<vmem>>, %arg5: memref<8x64xf32, #tpu.memory_space<vmem>>, %arg6: memref<1x8x32xf32, #tpu.memory_space<vmem>>) attributes {dimension_semantics = [#tpu.dimension_semantics<parallel>], iteration_bounds = array<i64: 2>, scalar_prefetch = 0 : i64, scratch_operands = 0 : i64, tpu.core_type = #tpu.core_type<tc>, window_params = [{transform_indices = @transform_0, window_bounds = array<i64: 1, 16, 32>}, {pipeline_mode = #tpu.pipeline_mode<synchronous>, transform_indices = @transform_1, window_bounds = array<i64: 3, 4, 40, 8>}, {pipeline_mode = #tpu.pipeline_mode<synchronous>, transform_indices = @transform_2, window_bounds = array<i64: 4, 8, 32>}, {pipeline_mode = #tpu.pipeline_mode<synchronous>, transform_indices = @transform_3, window_bounds = array<i64: 96, 64>}, {pipeline_mode = #tpu.pipeline_mode<synchronous>, transform_indices = @transform_4, window_bounds = array<i64: 8, 64>}, {transform_indices = @transform_5, window_bounds = array<i64: 1, 8, 32>}]} {
    %c0 = arith.constant 0 : index
    %c0_0 = arith.constant 0 : index
    %c0_1 = arith.constant 0 : index
    %0 = vector.load %arg1[%c0, %c0_0, %c0_1] : memref<1x16x32xf32, #tpu.memory_space<vmem>>, vector<1x16x32xf32>
    %1 = vector.shape_cast %0 : vector<1x16x32xf32> to vector<16x32xf32>
    %2 = vector.extract_strided_slice %1 {offsets = [0, 0], sizes = [8, 32], strides = [1, 1]} : vector<16x32xf32> to vector<8x32xf32>
    %3 = vector.extract_strided_slice %1 {offsets = [8, 0], sizes = [1, 8], strides = [1, 1]} : vector<16x32xf32> to vector<1x8xf32>
    %c0_2 = arith.constant 0 : index
    %c0_3 = arith.constant 0 : index
    %4 = vector.load %arg5[%c0_2, %c0_3] : memref<8x64xf32, #tpu.memory_space<vmem>>, vector<8x64xf32>
    %5 = vector.extract_strided_slice %4 {offsets = [0, 0], sizes = [1, 32], strides = [1, 1]} : vector<8x64xf32> to vector<1x32xf32>
    %6 = vector.extract_strided_slice %4 {offsets = [1, 0], sizes = [1, 32], strides = [1, 1]} : vector<8x64xf32> to vector<1x32xf32>
    %7 = vector.extract_strided_slice %4 {offsets = [2, 0], sizes = [1, 32], strides = [1, 1]} : vector<8x64xf32> to vector<1x32xf32>
    %8 = vector.extract_strided_slice %4 {offsets = [3, 0], sizes = [1, 32], strides = [1, 1]} : vector<8x64xf32> to vector<1x32xf32>
    %9 = vector.extract_strided_slice %4 {offsets = [4, 0], sizes = [1, 32], strides = [1, 1]} : vector<8x64xf32> to vector<1x32xf32>
    %10 = vector.extract_strided_slice %4 {offsets = [5, 0], sizes = [1, 64], strides = [1, 1]} : vector<8x64xf32> to vector<1x64xf32>
    %11 = vector.extract_strided_slice %4 {offsets = [6, 0], sizes = [1, 32], strides = [1, 1]} : vector<8x64xf32> to vector<1x32xf32>
    %cst = arith.constant 0.000000e+00 : f32
    %12 = vector.broadcast %cst : f32 to vector<1x8xf32>
    %13 = arith.cmpf one, %3, %12 : vector<1x8xf32>
    %cst_4 = arith.constant 0.000000e+00 : f32
    %cst_5 = arith.constant -1.000000e+09 : f32
    %14 = vector.broadcast %cst_4 : f32 to vector<1x8xf32>
    %15 = vector.broadcast %cst_5 : f32 to vector<1x8xf32>
    %16 = arith.select %13, %14, %15 : vector<1x8xi1>, vector<1x8xf32>
    %cst_6 = arith.constant dense<0.000000e+00> : vector<8xf32>
    %17 = vector.multi_reduction <add>, %2, %cst_6 [1] : vector<8x32xf32> to vector<8xf32>
    %18 = vector.shape_cast %17 : vector<8xf32> to vector<8x1xf32>
    %cst_7 = arith.constant 3.200000e+01 : f32
    %19 = vector.broadcast %cst_7 : f32 to vector<8x1xf32>
    %20 = arith.divf %18, %19 : vector<8x1xf32>
    %21 = vector.broadcast %20 : vector<8x1xf32> to vector<8x32xf32>
    %22 = arith.subf %2, %21 : vector<8x32xf32>
    %23 = arith.mulf %22, %22 : vector<8x32xf32>
    %cst_8 = arith.constant dense<0.000000e+00> : vector<8xf32>
    %24 = vector.multi_reduction <add>, %23, %cst_8 [1] : vector<8x32xf32> to vector<8xf32>
    %25 = vector.shape_cast %24 : vector<8xf32> to vector<8x1xf32>
    %cst_9 = arith.constant 0.0322580636 : f32
    %26 = vector.broadcast %cst_9 : f32 to vector<8x1xf32>
    %27 = arith.mulf %25, %26 : vector<8x1xf32>
    %28 = math.sqrt %27 : vector<8x1xf32>
    %29 = vector.broadcast %20 : vector<8x1xf32> to vector<8x32xf32>
    %30 = arith.subf %2, %29 : vector<8x32xf32>
    %31 = vector.broadcast %5 : vector<1x32xf32> to vector<8x32xf32>
    %32 = arith.mulf %31, %30 : vector<8x32xf32>
    %cst_10 = arith.constant 9.99999997E-7 : f32
    %33 = vector.broadcast %cst_10 : f32 to vector<8x1xf32>
    %34 = arith.addf %28, %33 : vector<8x1xf32>
    %35 = vector.broadcast %34 : vector<8x1xf32> to vector<8x32xf32>
    %36 = arith.divf %32, %35 : vector<8x32xf32>
    %37 = vector.broadcast %6 : vector<1x32xf32> to vector<8x32xf32>
    %38 = arith.addf %36, %37 : vector<8x32xf32>
    %39 = vector.shape_cast %38 : vector<8x32xf32> to vector<1x8x32xf32>
    %40 = vector.shape_cast %39 : vector<1x8x32xf32> to vector<1x8x32xf32>
    %41 = vector.broadcast %40 : vector<1x8x32xf32> to vector<4x8x32xf32>
    %c0_11 = arith.constant 0 : index
    %c0_12 = arith.constant 0 : index
    %c0_13 = arith.constant 0 : index
    %c0_14 = arith.constant 0 : index
    %42 = vector.load %arg2[%c0_11, %c0_12, %c0_13, %c0_14] : memref<3x4x40x8xf32, #tpu.memory_space<vmem>>, vector<1x4x40x8xf32>
    %43 = vector.shape_cast %42 : vector<1x4x40x8xf32> to vector<4x40x8xf32>
    %44 = vector.extract_strided_slice %43 {offsets = [0, 0, 0], sizes = [4, 32, 8], strides = [1, 1, 1]} : vector<4x40x8xf32> to vector<4x32x8xf32>
    %45 = vector.extract_strided_slice %43 {offsets = [0, 32, 0], sizes = [4, 1, 8], strides = [1, 1, 1]} : vector<4x40x8xf32> to vector<4x1x8xf32>
    "tpu.trace_start"() <{level = 10 : i32, message = "hnd,hdk->hnk"}> : () -> ()
    %cst_15 = arith.constant dense<0.000000e+00> : vector<4x8x8xf32>
    %46 = tpu.matmul %41, %44, %cst_15 {dimension_numbers = #tpu.dot_dimension_numbers<[2], [1], [1], [2], [0, 0, 0, 1, 1, 2], [0], [0]>} : vector<4x8x32xf32>, vector<4x32x8xf32>, vector<4x8x8xf32> -> vector<4x8x8xf32>
    "tpu.trace_stop"() : () -> ()
    %47 = vector.broadcast %45 : vector<4x1x8xf32> to vector<4x8x8xf32>
    %48 = arith.addf %46, %47 : vector<4x8x8xf32>
    %c1 = arith.constant 1 : index
    %c0_16 = arith.constant 0 : index
    %c0_17 = arith.constant 0 : index
    %c0_18 = arith.constant 0 : index
    %49 = vector.load %arg2[%c1, %c0_16, %c0_17, %c0_18] : memref<3x4x40x8xf32, #tpu.memory_space<vmem>>, vector<1x4x40x8xf32>
    %50 = vector.shape_cast %49 : vector<1x4x40x8xf32> to vector<4x40x8xf32>
    %51 = vector.extract_strided_slice %50 {offsets = [0, 0, 0], sizes = [4, 32, 8], strides = [1, 1, 1]} : vector<4x40x8xf32> to vector<4x32x8xf32>
    %52 = vector.extract_strided_slice %50 {offsets = [0, 32, 0], sizes = [4, 1, 8], strides = [1, 1, 1]} : vector<4x40x8xf32> to vector<4x1x8xf32>
    "tpu.trace_start"() <{level = 10 : i32, message = "hnd,hdk->hnk"}> : () -> ()
    %cst_19 = arith.constant dense<0.000000e+00> : vector<4x8x8xf32>
    %53 = tpu.matmul %41, %51, %cst_19 {dimension_numbers = #tpu.dot_dimension_numbers<[2], [1], [1], [2], [0, 0, 0, 1, 1, 2], [0], [0]>} : vector<4x8x32xf32>, vector<4x32x8xf32>, vector<4x8x8xf32> -> vector<4x8x8xf32>
    "tpu.trace_stop"() : () -> ()
    %54 = vector.broadcast %52 : vector<4x1x8xf32> to vector<4x8x8xf32>
    %55 = arith.addf %53, %54 : vector<4x8x8xf32>
    %c2 = arith.constant 2 : index
    %c0_20 = arith.constant 0 : index
    %c0_21 = arith.constant 0 : index
    %c0_22 = arith.constant 0 : index
    %56 = vector.load %arg2[%c2, %c0_20, %c0_21, %c0_22] : memref<3x4x40x8xf32, #tpu.memory_space<vmem>>, vector<1x4x40x8xf32>
    %57 = vector.shape_cast %56 : vector<1x4x40x8xf32> to vector<4x40x8xf32>
    %58 = vector.extract_strided_slice %57 {offsets = [0, 0, 0], sizes = [4, 32, 8], strides = [1, 1, 1]} : vector<4x40x8xf32> to vector<4x32x8xf32>
    %59 = vector.extract_strided_slice %57 {offsets = [0, 32, 0], sizes = [4, 1, 8], strides = [1, 1, 1]} : vector<4x40x8xf32> to vector<4x1x8xf32>
    "tpu.trace_start"() <{level = 10 : i32, message = "hnd,hdk->hnk"}> : () -> ()
    %cst_23 = arith.constant dense<0.000000e+00> : vector<4x8x8xf32>
    %60 = tpu.matmul %41, %58, %cst_23 {dimension_numbers = #tpu.dot_dimension_numbers<[2], [1], [1], [2], [0, 0, 0, 1, 1, 2], [0], [0]>} : vector<4x8x32xf32>, vector<4x32x8xf32>, vector<4x8x8xf32> -> vector<4x8x8xf32>
    "tpu.trace_stop"() : () -> ()
    %61 = vector.broadcast %59 : vector<4x1x8xf32> to vector<4x8x8xf32>
    %62 = arith.addf %60, %61 : vector<4x8x8xf32>
    "tpu.trace_start"() <{level = 10 : i32, message = "hqc,hkc->hqk"}> : () -> ()
    %cst_24 = arith.constant dense<0.000000e+00> : vector<4x8x8xf32>
    %63 = tpu.matmul %48, %55, %cst_24 {dimension_numbers = #tpu.dot_dimension_numbers<[2], [2], [1], [1], [0, 0, 0, 1, 1, 1], [0], [0]>} : vector<4x8x8xf32>, vector<4x8x8xf32>, vector<4x8x8xf32> -> vector<4x8x8xf32>
    "tpu.trace_stop"() : () -> ()
    %cst_25 = arith.constant 0.353553385 : f32
    %64 = vector.broadcast %cst_25 : f32 to vector<4x8x8xf32>
    %65 = arith.mulf %63, %64 : vector<4x8x8xf32>
    %66 = vector.shape_cast %16 : vector<1x8xf32> to vector<1x1x8xf32>
    %67 = vector.broadcast %66 : vector<1x1x8xf32> to vector<4x8x8xf32>
    %68 = arith.addf %65, %67 : vector<4x8x8xf32>
    %cst_26 = arith.constant dense<0xFF800000> : vector<4x8xf32>
    %69 = vector.multi_reduction <maximumf>, %68, %cst_26 [2] : vector<4x8x8xf32> to vector<4x8xf32>
    %70 = vector.shape_cast %69 : vector<4x8xf32> to vector<4x8x1xf32>
    %71 = vector.broadcast %70 : vector<4x8x1xf32> to vector<4x8x8xf32>
    %72 = arith.subf %68, %71 : vector<4x8x8xf32>
    %73 = math.exp %72 : vector<4x8x8xf32>
    %cst_27 = arith.constant dense<0.000000e+00> : vector<4x8xf32>
    %74 = vector.multi_reduction <add>, %73, %cst_27 [2] : vector<4x8x8xf32> to vector<4x8xf32>
    %75 = vector.shape_cast %74 : vector<4x8xf32> to vector<4x8x1xf32>
    "tpu.trace_start"() <{level = 10 : i32, message = "hqk,hkd->hqd"}> : () -> ()
    %cst_28 = arith.constant dense<0.000000e+00> : vector<4x8x8xf32>
    %76 = tpu.matmul %73, %62, %cst_28 {dimension_numbers = #tpu.dot_dimension_numbers<[2], [1], [1], [2], [0, 0, 0, 1, 1, 2], [0], [0]>} : vector<4x8x8xf32>, vector<4x8x8xf32>, vector<4x8x8xf32> -> vector<4x8x8xf32>
    "tpu.trace_stop"() : () -> ()
    %77 = tpu.reciprocal %75 {approx = true} : vector<4x8x1xf32> -> vector<4x8x1xf32>
    %78 = vector.broadcast %77 : vector<4x8x1xf32> to vector<4x8x8xf32>
    %79 = arith.mulf %76, %78 : vector<4x8x8xf32>
    %c0_29 = arith.constant 0 : index
    %c0_30 = arith.constant 0 : index
    %c0_31 = arith.constant 0 : index
    %80 = vector.load %arg3[%c0_29, %c0_30, %c0_31] : memref<4x8x32xf32, #tpu.memory_space<vmem>>, vector<4x8x32xf32>
    "tpu.trace_start"() <{level = 10 : i32, message = "hqd,hdo->hqo"}> : () -> ()
    %cst_32 = arith.constant dense<0.000000e+00> : vector<4x8x32xf32>
    %81 = tpu.matmul %79, %80, %cst_32 {dimension_numbers = #tpu.dot_dimension_numbers<[2], [1], [1], [2], [0, 0, 0, 1, 1, 2], [0], [0]>} : vector<4x8x8xf32>, vector<4x8x32xf32>, vector<4x8x32xf32> -> vector<4x8x32xf32>
    "tpu.trace_stop"() : () -> ()
    %cst_33 = arith.constant dense<0.000000e+00> : vector<8x32xf32>
    %82 = vector.multi_reduction <add>, %81, %cst_33 [0] : vector<4x8x32xf32> to vector<8x32xf32>
    %83 = vector.broadcast %7 : vector<1x32xf32> to vector<8x32xf32>
    %84 = arith.addf %82, %83 : vector<8x32xf32>
    %85 = arith.addf %2, %84 : vector<8x32xf32>
    %cst_34 = arith.constant dense<0.000000e+00> : vector<8xf32>
    %86 = vector.multi_reduction <add>, %85, %cst_34 [1] : vector<8x32xf32> to vector<8xf32>
    %87 = vector.shape_cast %86 : vector<8xf32> to vector<8x1xf32>
    %cst_35 = arith.constant 3.200000e+01 : f32
    %88 = vector.broadcast %cst_35 : f32 to vector<8x1xf32>
    %89 = arith.divf %87, %88 : vector<8x1xf32>
    %90 = vector.broadcast %89 : vector<8x1xf32> to vector<8x32xf32>
    %91 = arith.subf %85, %90 : vector<8x32xf32>
    %92 = arith.mulf %91, %91 : vector<8x32xf32>
    %cst_36 = arith.constant dense<0.000000e+00> : vector<8xf32>
    %93 = vector.multi_reduction <add>, %92, %cst_36 [1] : vector<8x32xf32> to vector<8xf32>
    %94 = vector.shape_cast %93 : vector<8xf32> to vector<8x1xf32>
    %cst_37 = arith.constant 0.0322580636 : f32
    %95 = vector.broadcast %cst_37 : f32 to vector<8x1xf32>
    %96 = arith.mulf %94, %95 : vector<8x1xf32>
    %97 = math.sqrt %96 : vector<8x1xf32>
    %98 = vector.broadcast %89 : vector<8x1xf32> to vector<8x32xf32>
    %99 = arith.subf %85, %98 : vector<8x32xf32>
    %100 = vector.broadcast %8 : vector<1x32xf32> to vector<8x32xf32>
    %101 = arith.mulf %100, %99 : vector<8x32xf32>
    %cst_38 = arith.constant 9.99999997E-7 : f32
    %102 = vector.broadcast %cst_38 : f32 to vector<8x1xf32>
    %103 = arith.addf %97, %102 : vector<8x1xf32>
    %104 = vector.broadcast %103 : vector<8x1xf32> to vector<8x32xf32>
    %105 = arith.divf %101, %104 : vector<8x32xf32>
    %106 = vector.broadcast %9 : vector<1x32xf32> to vector<8x32xf32>
    %107 = arith.addf %105, %106 : vector<8x32xf32>
    %c0_39 = arith.constant 0 : index
    %c0_40 = arith.constant 0 : index
    %108 = vector.load %arg4[%c0_39, %c0_40] : memref<96x64xf32, #tpu.memory_space<vmem>>, vector<32x64xf32>
    %c32 = arith.constant 32 : index
    %c0_41 = arith.constant 0 : index
    %109 = vector.load %arg4[%c32, %c0_41] : memref<96x64xf32, #tpu.memory_space<vmem>>, vector<64x32xf32>
    %cst_42 = arith.constant dense<0.000000e+00> : vector<8x64xf32>
    %110 = tpu.matmul %107, %108, %cst_42 {dimension_numbers = #tpu.dot_dimension_numbers<[1], [0], [0], [1], [0, 0, 1, 1], [], []>} : vector<8x32xf32>, vector<32x64xf32>, vector<8x64xf32> -> vector<8x64xf32>
    %111 = vector.broadcast %10 : vector<1x64xf32> to vector<8x64xf32>
    %112 = arith.addf %110, %111 : vector<8x64xf32>
    %cst_43 = arith.constant 0.000000e+00 : f32
    %113 = vector.broadcast %cst_43 : f32 to vector<8x64xf32>
    %114 = arith.maximumf %112, %113 : vector<8x64xf32>
    %cst_44 = arith.constant dense<0.000000e+00> : vector<8x32xf32>
    %115 = tpu.matmul %114, %109, %cst_44 {dimension_numbers = #tpu.dot_dimension_numbers<[1], [0], [0], [1], [0, 0, 1, 1], [], []>} : vector<8x64xf32>, vector<64x32xf32>, vector<8x32xf32> -> vector<8x32xf32>
    %116 = vector.broadcast %11 : vector<1x32xf32> to vector<8x32xf32>
    %117 = arith.addf %115, %116 : vector<8x32xf32>
    %118 = arith.addf %85, %117 : vector<8x32xf32>
    %119 = vector.shape_cast %118 : vector<8x32xf32> to vector<1x8x32xf32>
    %c0_45 = arith.constant 0 : index
    %c0_46 = arith.constant 0 : index
    %c0_47 = arith.constant 0 : index
    %120 = vector.load %arg6[%c0_45, %c0_46, %c0_47] : memref<1x8x32xf32, #tpu.memory_space<vmem>>, vector<1x8x32xf32>
    tpu.vector_store %arg6[%c0_45, %c0_46, %c0_47], %119 {strides = array<i32>} : memref<1x8x32xf32, #tpu.memory_space<vmem>>, vector<1x8x32xf32>,
    return
  }
  func.func @transform_0(%arg0: i32) -> (i32, i32, i32) {
    %c0_i32 = arith.constant 0 : i32
    %c0_i32_0 = arith.constant 0 : i32
    %c0_i32_1 = arith.constant 0 : i32
    return %arg0, %c0_i32, %c0_i32_0 : i32, i32, i32
  }
  func.func @transform_1(%arg0: i32) -> (i32, i32, i32, i32) {
    %c0_i32 = arith.constant 0 : i32
    %c0_i32_0 = arith.constant 0 : i32
    %c0_i32_1 = arith.constant 0 : i32
    %c0_i32_2 = arith.constant 0 : i32
    %c0_i32_3 = arith.constant 0 : i32
    return %c0_i32, %c0_i32_0, %c0_i32_1, %c0_i32_2 : i32, i32, i32, i32
  }
  func.func @transform_2(%arg0: i32) -> (i32, i32, i32) {
    %c0_i32 = arith.constant 0 : i32
    %c0_i32_0 = arith.constant 0 : i32
    %c0_i32_1 = arith.constant 0 : i32
    %c0_i32_2 = arith.constant 0 : i32
    return %c0_i32, %c0_i32_0, %c0_i32_1 : i32, i32, i32
  }
  func.func @transform_3(%arg0: i32) -> (i32, i32) {
    %c0_i32 = arith.constant 0 : i32
    %c0_i32_0 = arith.constant 0 : i32
    %c0_i32_1 = arith.constant 0 : i32
    return %c0_i32, %c0_i32_0 : i32, i32
  }
  func.func @transform_4(%arg0: i32) -> (i32, i32) {
    %c0_i32 = arith.constant 0 : i32
    %c0_i32_0 = arith.constant 0 : i32
    %c0_i32_1 = arith.constant 0 : i32
    return %c0_i32, %c0_i32_0 : i32, i32
  }
  func.func @transform_5(%arg0: i32) -> (i32, i32, i32) {
    %c0_i32 = arith.constant 0 : i32
    %c0_i32_0 = arith.constant 0 : i32
    %c0_i32_1 = arith.constant 0 : i32
    return %arg0, %c0_i32, %c0_i32_0 : i32, i32, i32
  }
}

</mosaic_0001>

<llo_original>
// kernel: tpu_custom_call.1
$region0: #{tpu_custom_call.1}
  #allocation0 [shape = 'u32[]', space=smem, size = 0x4, offset = 0x4, fixed_abs, tag = 'smem constant byte address 0x4 - core index']
  #allocation1 [shape = 'u32[72,128]{1,0:T(1,128)}', space=vmem, size = 0x9000, scoped, tag = 'internal scratch']
  %s0 = inlined_call_operand.vmem [shape: f32[2,16,32], index: 0, kind: input, shape index: {}]
  %s1 = inlined_call_operand.vmem [shape: f32[3,4,40,8], index: 1, kind: input, shape index: {}]
  %s2 = inlined_call_operand.vmem [shape: f32[4,8,32], index: 2, kind: input, shape index: {}]
  %s3 = inlined_call_operand.vmem [shape: f32[96,64], index: 3, kind: input, shape index: {}]
  %s4 = inlined_call_operand.vmem [shape: f32[8,64], index: 4, kind: input, shape index: {}]
  %s5 = inlined_call_operand.hbm [shape: f32[2,8,32], index: 5, kind: output, shape index: {}]
  %s6 = sld [smem:[#allocation0]]
  $region53: #{tpu_custom_call.1} parent=0
    _
  %s8 = ssub.s32 1, %s6
  %s9 = scalar_select 0, %s8, %s6
  $region1: #{tpu_custom_call.1} parent=0
    #allocation2 [shape = 'u8[8192]{0}', space=vmem, size = 0x2000, scoped, tag = 'output window, operand 0']
    #allocation3 [shape = 's32[2]{0}', space=sflag, size = 0x8, scoped, tag = 'scoped memory for tpu_custom_call.1']
    %10 = vsyncpa [#allocation3], 0
    %s11 = scalar_lea.sflag [#allocation3], 1
    %12 = vsyncpa %s11, 0
    loop: start=0, step=1, limit=4
    $region2: #{tpu_custom_call.1} parent=1 // loop_pre_header
      _
    $region3: #{tpu_custom_call.1} parent=1 // loop_header
      %s14 = sphi 0, %s18
      %p15 = scmp.ge.s32.totalorder %s14, 4
      %s24 = sphi 0, %s26
      %s27 = sphi 0, %s24
      %s28 = sphi 0, %s27
      %s44 = sphi 0, %s28
      %s48 = sphi 0, %s48
      %s50 = sphi 0, %s48
      %s51 = sphi 0, %s50
      %s65 = sphi 0, %s51
      %s69 = sphi 0, %s69
      %s71 = sphi 0, %s69
      %s72 = sphi 0, %s71
      %s86 = sphi 0, %s72
      %s90 = sphi 0, %s90
      %s92 = sphi 0, %s90
      %s93 = sphi 0, %s92
      %s107 = sphi 0, %s93
      %s111 = sphi 0, %s111
      %s113 = sphi 0, %s111
      %s114 = sphi 0, %s113
      %s128 = sphi 0, %s114
      %s134 = sphi 0, %s136
      %s137 = sphi 0, %s134
      %s138 = sphi 0, %s137
      %s154 = sphi 0, %s138
    $region4: #{tpu_custom_call.1} parent=1 // loop_header_branch
      %17 = sbr.rel (%p15) target = $region8
    $region5: #{tpu_custom_call.1} parent=1 // loop_body
      %s19 = ssub.s32 %s14, 1
      %s20 = ssub.s32 %s14, 2
      %s21 = sadd.s32 %s14, 1
      %s22 = ssub.s32 %s14, %s21
      %p23 = scmp.eq.s32.totalorder %s22, 0
      %s25 = sadd.s32 %s24, 1
      %s26 = scalar_select %p23, %s24, %s25
      %p29 = pneg %p23
      %p30 = scmp.eq.s32.totalorder %s14, 1
      %p31 = por %p29, %p30
      %p32 = scmp.ne.s32.totalorder %s24, %s27
      %p33 = scmp.eq.s32.totalorder %s14, 0
      %p34 = por %p32, %p33
      %p35 = scmp.ne.s32.totalorder %s24, %s27
      %p36 = scmp.eq.s32.totalorder %s19, 1
      %p37 = por %p35, %p36
      %p38 = scmp.ne.s32.totalorder %s27, %s28
      %p39 = scmp.eq.s32.totalorder %s19, 0
      %p40 = por %p38, %p39
      %p41 = scmp.ne.s32.totalorder %s27, %s28
      %p42 = scmp.eq.s32.totalorder %s20, 1
      %p43 = por %p41, %p42
      %p45 = scmp.ne.s32.totalorder %s28, %s44
      %p46 = scmp.eq.s32.totalorder %s20, 0
      %p47 = por %p45, %p46
      %s49 = sadd.s32 %s48, 1
      %p52 = scmp.eq.s32.totalorder %s14, 1
      %p53 = scmp.ne.s32.totalorder %s48, %s50
      %p54 = scmp.eq.s32.totalorder %s14, 0
      %p55 = por %p53, %p54
      %p56 = scmp.ne.s32.totalorder %s48, %s50
      %p57 = scmp.eq.s32.totalorder %s19, 1
      %p58 = por %p56, %p57
      %p59 = scmp.ne.s32.totalorder %s50, %s51
      %p60 = scmp.eq.s32.totalorder %s19, 0
      %p61 = por %p59, %p60
      %p62 = scmp.ne.s32.totalorder %s50, %s51
      %p63 = scmp.eq.s32.totalorder %s20, 1
      %p64 = por %p62, %p63
      %p66 = scmp.ne.s32.totalorder %s51, %s65
      %p67 = scmp.eq.s32.totalorder %s20, 0
      %p68 = por %p66, %p67
      %s70 = sadd.s32 %s69, 1
      %p73 = scmp.eq.s32.totalorder %s14, 1
      %p74 = scmp.ne.s32.totalorder %s69, %s71
      %p75 = scmp.eq.s32.totalorder %s14, 0
      %p76 = por %p74, %p75
      %p77 = scmp.ne.s32.totalorder %s69, %s71
      %p78 = scmp.eq.s32.totalorder %s19, 1
      %p79 = por %p77, %p78
      %p80 = scmp.ne.s32.totalorder %s71, %s72
      %p81 = scmp.eq.s32.totalorder %s19, 0
      %p82 = por %p80, %p81
      %p83 = scmp.ne.s32.totalorder %s71, %s72
      %p84 = scmp.eq.s32.totalorder %s20, 1
      %p85 = por %p83, %p84
      %p87 = scmp.ne.s32.totalorder %s72, %s86
      %p88 = scmp.eq.s32.totalorder %s20, 0
      %p89 = por %p87, %p88
      %s91 = sadd.s32 %s90, 1
      %p94 = scmp.eq.s32.totalorder %s14, 1
      %p95 = scmp.ne.s32.totalorder %s90, %s92
      %p96 = scmp.eq.s32.totalorder %s14, 0
      %p97 = por %p95, %p96
      %p98 = scmp.ne.s32.totalorder %s90, %s92
      %p99 = scmp.eq.s32.totalorder %s19, 1
      %p100 = por %p98, %p99
      %p101 = scmp.ne.s32.totalorder %s92, %s93
      %p102 = scmp.eq.s32.totalorder %s19, 0
      %p103 = por %p101, %p102
      %p104 = scmp.ne.s32.totalorder %s92, %s93
      %p105 = scmp.eq.s32.totalorder %s20, 1
      %p106 = por %p104, %p105
      %p108 = scmp.ne.s32.totalorder %s93, %s107
      %p109 = scmp.eq.s32.totalorder %s20, 0
      %p110 = por %p108, %p109
      %s112 = sadd.s32 %s111, 1
      %p115 = scmp.eq.s32.totalorder %s14, 1
      %p116 = scmp.ne.s32.totalorder %s111, %s113
      %p117 = scmp.eq.s32.totalorder %s14, 0
      %p118 = por %p116, %p117
      %p119 = scmp.ne.s32.totalorder %s111, %s113
      %p120 = scmp.eq.s32.totalorder %s19, 1
      %p121 = por %p119, %p120
      %p122 = scmp.ne.s32.totalorder %s113, %s114
      %p123 = scmp.eq.s32.totalorder %s19, 0
      %p124 = por %p122, %p123
      %p125 = scmp.ne.s32.totalorder %s113, %s114
      %p126 = scmp.eq.s32.totalorder %s20, 1
      %p127 = por %p125, %p126
      %p129 = scmp.ne.s32.totalorder %s114, %s128
      %p130 = scmp.eq.s32.totalorder %s20, 0
      %p131 = por %p129, %p130
      %s132 = ssub.s32 %s14, %s21
      %p133 = scmp.eq.s32.totalorder %s132, 0
      %s135 = sadd.s32 %s134, 1
      %s136 = scalar_select %p133, %s134, %s135
      %p139 = pneg %p133
      %p140 = scmp.eq.s32.totalorder %s14, 1
      %p141 = por %p139, %p140
      %p142 = scmp.ne.s32.totalorder %s134, %s137
      %p143 = scmp.eq.s32.totalorder %s14, 0
      %p144 = por %p142, %p143
      %p145 = scmp.ne.s32.totalorder %s134, %s137
      %p146 = scmp.eq.s32.totalorder %s19, 1
      %p147 = por %p145, %p146
      %p148 = scmp.ne.s32.totalorder %s137, %s138
      %p149 = scmp.eq.s32.totalorder %s19, 0
      %p150 = por %p148, %p149
      %p151 = scmp.ne.s32.totalorder %s137, %s138
      %p152 = scmp.eq.s32.totalorder %s20, 1
      %p153 = por %p151, %p152
      %p155 = scmp.ne.s32.totalorder %s138, %s154
      %p156 = scmp.eq.s32.totalorder %s20, 0
      %p157 = por %p155, %p156
      %p158 = scmp.le.s32.totalorder 1, %s14
      %p159 = scmp.lt.s32.totalorder %s14, 3
      %p160 = pnand %p158, %p159
      %p161 = pneg %p160
      // Predicated region
      $region9: #{tpu_custom_call.1} parent=5 // pred_check
        _
      $region10: #{tpu_custom_call.1} parent=5 // pred_check_branch
        %163 = sbr.rel (%p160) target = $region12
      $region11: #{tpu_custom_call.1} parent=5 // pred_region
        %s164 = ssub.s32 %s14, 1
        // Predicated region
        $region13: #{tpu_custom_call.1} parent=11 // pred_check
          %p165 = pneg %p61
        $region14: #{tpu_custom_call.1} parent=11 // pred_check_branch
          %167 = sbr.rel (%p165) target = $region16
        $region15: #{tpu_custom_call.1} parent=11 // pred_region
          _
        $region16: #{tpu_custom_call.1} parent=11 // pred_fallthru
          _
        // Predicated region
        $region17: #{tpu_custom_call.1} parent=11 // pred_check
          %p168 = pneg %p82
        $region18: #{tpu_custom_call.1} parent=11 // pred_check_branch
          %170 = sbr.rel (%p168) target = $region20
        $region19: #{tpu_custom_call.1} parent=11 // pred_region
          _
        $region20: #{tpu_custom_call.1} parent=11 // pred_fallthru
          _
        // Predicated region
        $region21: #{tpu_custom_call.1} parent=11 // pred_check
          %p171 = pneg %p103
        $region22: #{tpu_custom_call.1} parent=11 // pred_check_branch
          %173 = sbr.rel (%p171) target = $region24
        $region23: #{tpu_custom_call.1} parent=11 // pred_region
          _
        $region24: #{tpu_custom_call.1} parent=11 // pred_fallthru
          _
        // Predicated region
        $region25: #{tpu_custom_call.1} parent=11 // pred_check
          %p174 = pneg %p124
        $region26: #{tpu_custom_call.1} parent=11 // pred_check_branch
          %176 = sbr.rel (%p174) target = $region28
        $region27: #{tpu_custom_call.1} parent=11 // pred_region
          _
        $region28: #{tpu_custom_call.1} parent=11 // pred_fallthru
          _
      $region12: #{tpu_custom_call.1} parent=5 // pred_fallthru
        _
      %p177 = scmp.lt.s32.totalorder %s14, 2
      // Predicated region
      $region29: #{tpu_custom_call.1} parent=5 // pred_check
        %p178 = pneg %p177
      $region30: #{tpu_custom_call.1} parent=5 // pred_check_branch
        %180 = sbr.rel (%p178) target = $region32
      $region31: #{tpu_custom_call.1} parent=5 // pred_region
        // Predicated region
        $region33: #{tpu_custom_call.1} parent=31 // pred_check
          %p181 = pneg %p34
        $region34: #{tpu_custom_call.1} parent=31 // pred_check_branch
          %183 = sbr.rel (%p181) target = $region36
        $region35: #{tpu_custom_call.1} parent=31 // pred_region
          %p184 = scmp.lt.s32.totalorder %s14, 1
          %s185 = scalar_select %p184, %s14, 1
          %s186 = smul.addr %s185, 2
          %s187 = smul.addr %s186, 8
          %s188 = scalar_lea.vmem %s0, %s187
        $region36: #{tpu_custom_call.1} parent=31 // pred_fallthru
          _
      $region32: #{tpu_custom_call.1} parent=5 // pred_fallthru
        _
      %p189 = scmp.le.s32.totalorder 1, %s14
      %p190 = scmp.lt.s32.totalorder %s14, 3
      %p191 = pnand %p189, %p190
      %p192 = pneg %p191
      // Predicated region
      $region37: #{tpu_custom_call.1} parent=5 // pred_check
        _
      $region38: #{tpu_custom_call.1} parent=5 // pred_check_branch
        %194 = sbr.rel (%p191) target = $region40
      $region39: #{tpu_custom_call.1} parent=5 // pred_region
        %s195 = ssub.s32 %s14, 1
        %p196 = scmp.lt.s32.totalorder %s19, 1
        %s197 = scalar_select %p196, %s19, 1
        %s198 = smul.addr %s197, 2
        %s199 = smul.addr %s198, 8
        %s200 = scalar_lea.vmem %s0, %s199
        %p201 = pneg %p40
        %p202 = pneg %p37
        %p203 = pneg %p61
        %p204 = pneg %p58
        %p205 = pneg %p82
        %p206 = pneg %p79
        %p207 = pneg %p103
        %p208 = pneg %p100
        %p209 = pneg %p124
        %p210 = pneg %p121
        %p211 = pneg %p150
        %p212 = pneg %p147
        %s213 = sand.u32 %s137, 1
        %s214 = scalar_lea.sflag [#allocation3], %s213
        %s215 = sand.u32 %s137, 1
        %s216 = smul.addr %s215, 8
        %s217 = scalar_lea.vmem [#allocation2], %s216
        %p218 = scmp.lt.s32.totalorder %s19, 1
        %s219 = scalar_select %p218, %s19, 1
        %s220 = smul.addr %s219, 2
        %s221 = smul.addr %s220, 8
        %s222 = scalar_lea.vmem %s0, %s221
        %v223 = vld [vmem:[%s222] sm:$0xff]
        %v224 = vld [vmem:[%s222 + $0x8] sm:$0xff]
        %v225 = vld [vmem:[%s4] sm:$0xff]
        %vm226 = vcmp.ne.f32.partialorder %v224, 0.0
        %v227 = vsel %vm226, 0.0, -1e+09
        %vm228 = vcmask 261120
        %v229 = vsel %vm228, %v223, 0.0
        %230 = vadd.xlane.f32.xlu0 %v229
        %v231 = vpop.xlane.xlu0 %230
        %v232 = vrcp.pop 32.0
        %v233 = vmul.f32 32.0, %v232
        %v234 = vsub.f32 1.0, %v233
        %v235 = vmul.f32 %v232, %v234
        %v236 = vadd.f32 %v232, %v235
        %vm237 = vweird.f32 %v232
        %v238 = vsel %vm237, %v232, %v236
        %v239 = vmul.f32 %v231, %v238
        %v240 = vsub.f32 %v223, %v239
        %v241 = vmul.f32 %v240, %v240
        %v242 = vsel %vm228, %v241, 0.0
        %243 = vadd.xlane.f32.xlu0 %v242
        %v244 = vpop.xlane.xlu0 %243
        %v245 = vmul.f32 %v244, 0.032258064
        %v246 = vrsqrt.pop %v245
        %v247 = vmul.f32 %v246, %v245
        %v248 = vmul.f32 %v247, %v246
        %v249 = vmul.f32 0.5, %v248
        %v250 = vsub.f32 1.5, %v249
        %v251 = vmul.f32 %v246, %v250
        %v252 = vmul.f32 %v245, %v251
        %vm253 = vcmp.eq.f32.partialorder %v245, inf
        %v254 = vsel %vm253, %v245, %v252
        %vm255 = vcmp.eq.f32.partialorder %v245, 0.0
        %v256 = vand.u32 %v245, 2147483648
        %v257 = vsel %vm255, %v256, %v254
        %v258 = vperm.slane %v225, 0
        %v259 = vmul.f32 %v258, %v240
        %v260 = vadd.f32 %v257, 1e-06
        %v261 = vrcp.pop %v260
        %v262 = vmul.f32 %v260, %v261
        %v263 = vsub.f32 1.0, %v262
        %v264 = vmul.f32 %v261, %v263
        %v265 = vadd.f32 %v261, %v264
        %vm266 = vweird.f32 %v260
        %vm267 = vweird.f32 %v261
        %vm268 = vmor %vm266, %vm267
        %v269 = vsel %vm268, %v261, %v265
        %v270 = vand.u32 2147483647, %v260
        %vm271 = vcmp.eq.f32.partialorder %v270, 8.507059e+37
        %v272 = vand.u32 %v260, 2147483648
        %v273 = vor.u32 1.1754944e-38, %v272
        %v274 = vsel %vm271, %v273, %v269
        %v275 = vmul.f32 %v259, %v274
        %v276 = vperm.slane %v225, 1
        %v277 = vadd.f32 %v275, %v276
        %v278 = vld [vmem:[%s1] sm:$0xff]
        %v279 = vld [vmem:[%s1 + $0x8] sm:$0xff]
        %v280 = vld [vmem:[%s1 + $0x10] sm:$0xff]
        %v281 = vld [vmem:[%s1 + $0x18] sm:$0xff]
        %v282 = vld [vmem:[%s1 + $0x20] sm:$0xff]
        %v283 = vld [vmem:[%s1 + $0x28] sm:$0xff]
        %v284 = vld [vmem:[%s1 + $0x30] sm:$0xff]
        %v285 = vld [vmem:[%s1 + $0x38] sm:$0xff]
        %v286 = vld [vmem:[%s1 + $0x40] sm:$0xff]
        %v287 = vld [vmem:[%s1 + $0x48] sm:$0xff]
        %v288 = vld [vmem:[%s1 + $0x50] sm:$0xff]
        %v289 = vld [vmem:[%s1 + $0x58] sm:$0xff]
        %v290 = vld [vmem:[%s1 + $0x60] sm:$0xff]
        %v291 = vld [vmem:[%s1 + $0x68] sm:$0xff]
        %v292 = vld [vmem:[%s1 + $0x70] sm:$0xff]
        %v293 = vld [vmem:[%s1 + $0x78] sm:$0xff]
        %v294 = vld [vmem:[%s1 + $0x80] sm:$0xff]
        %v295 = vld [vmem:[%s1 + $0x88] sm:$0xff]
        %v296 = vld [vmem:[%s1 + $0x90] sm:$0xff]
        %v297 = vld [vmem:[%s1 + $0x98] sm:$0xff]
        %v298 = vperm.slane %v282, 0
        %v299 = vperm.slane %v287, 0
        %v300 = vperm.slane %v292, 0
        %v301 = vperm.slane %v297, 0
        %v303 = vsel %vm228, %v277, 0
        %305 = vmatpush.msra.mxu0 0.0
        %306 = vmatpush.msra.mxu0 0.0
        %307 = vmatpush.msra.mxu0 0.0
        %308 = vmatpush.msra.mxu0 0.0
        %309 = vmatpush.msra.mxu0 0.0
        %310 = vmatpush.msra.mxu0 0.0
        %311 = vmatpush.msra.mxu0 0.0
        %312 = vmatpush.msra.mxu0 0.0
        %313 = vmatpush.msra.mxu0 0.0
        %314 = vmatpush.msra.mxu0 0.0
        %315 = vmatpush.msra.mxu0 0.0
        %316 = vmatpush.msra.mxu0 0.0
        %317 = vmatpush.msra.mxu0 %v281
        %318 = vmatpush.msra.mxu0 %v280
        %319 = vmatpush.msra.mxu0 %v279
        %320 = vmatpush.msra.mxu0 %v278
        %321 = vmatmul.f32.gmra.mxu0 %v303
        %v322 = vpop.f32.mrf.mxu0
        %v323 = vadd.f32 %v298, %v322
        %324 = vdwg.mxu0
        %325 = vmatpush.msra.mxu0 0.0
        %326 = vmatpush.msra.mxu0 0.0
        %327 = vmatpush.msra.mxu0 0.0
        %328 = vmatpush.msra.mxu0 0.0
        %329 = vmatpush.msra.mxu0 0.0
        %330 = vmatpush.msra.mxu0 0.0
        %331 = vmatpush.msra.mxu0 0.0
        %332 = vmatpush.msra.mxu0 0.0
        %333 = vmatpush.msra.mxu0 0.0
        %334 = vmatpush.msra.mxu0 0.0
        %335 = vmatpush.msra.mxu0 0.0
        %336 = vmatpush.msra.mxu0 0.0
        %337 = vmatpush.msra.mxu0 %v286
        %338 = vmatpush.msra.mxu0 %v285
        %339 = vmatpush.msra.mxu0 %v284
        %340 = vmatpush.msra.mxu0 %v283
        %341 = vmatmul.f32.gmra.mxu0 %v303
        %v342 = vpop.f32.mrf.mxu0
        %v343 = vadd.f32 %v299, %v342
        %344 = vdwg.mxu0
        %345 = vmatpush.msra.mxu0 0.0
        %346 = vmatpush.msra.mxu0 0.0
        %347 = vmatpush.msra.mxu0 0.0
        %348 = vmatpush.msra.mxu0 0.0
        %349 = vmatpush.msra.mxu0 0.0
        %350 = vmatpush.msra.mxu0 0.0
        %351 = vmatpush.msra.mxu0 0.0
        %352 = vmatpush.msra.mxu0 0.0
        %353 = vmatpush.msra.mxu0 0.0
        %354 = vmatpush.msra.mxu0 0.0
        %355 = vmatpush.msra.mxu0 0.0
        %356 = vmatpush.msra.mxu0 0.0
        %357 = vmatpush.msra.mxu0 %v291
        %358 = vmatpush.msra.mxu0 %v290
        %359 = vmatpush.msra.mxu0 %v289
        %360 = vmatpush.msra.mxu0 %v288
        %361 = vmatmul.f32.gmra.mxu0 %v303
        %v362 = vpop.f32.mrf.mxu0
        %v363 = vadd.f32 %v300, %v362
        %364 = vdwg.mxu0
        %365 = vmatpush.msra.mxu0 0.0
        %366 = vmatpush.msra.mxu0 0.0
        %367 = vmatpush.msra.mxu0 0.0
        %368 = vmatpush.msra.mxu0 0.0
        %369 = vmatpush.msra.mxu0 0.0
        %370 = vmatpush.msra.mxu0 0.0
        %371 = vmatpush.msra.mxu0 0.0
        %372 = vmatpush.msra.mxu0 0.0
        %373 = vmatpush.msra.mxu0 0.0
        %374 = vmatpush.msra.mxu0 0.0
        %375 = vmatpush.msra.mxu0 0.0
        %376 = vmatpush.msra.mxu0 0.0
        %377 = vmatpush.msra.mxu0 %v296
        %378 = vmatpush.msra.mxu0 %v295
        %379 = vmatpush.msra.mxu0 %v294
        %380 = vmatpush.msra.mxu0 %v293
        %381 = vmatmul.f32.gmra.mxu0 %v303
        %v382 = vpop.f32.mrf.mxu0
        %v383 = vadd.f32 %v301, %v382
        %384 = vdwg.mxu0
        %s385 = scalar_lea.vmem %s1, 160
        %v386 = vld [vmem:[%s385] sm:$0xff]
        %v387 = vld [vmem:[%s385 + $0x8] sm:$0xff]
        %v388 = vld [vmem:[%s385 + $0x10] sm:$0xff]
        %v389 = vld [vmem:[%s385 + $0x18] sm:$0xff]
        %v390 = vld [vmem:[%s385 + $0x20] sm:$0xff]
        %v391 = vld [vmem:[%s385 + $0x28] sm:$0xff]
        %v392 = vld [vmem:[%s385 + $0x30] sm:$0xff]
        %v393 = vld [vmem:[%s385 + $0x38] sm:$0xff]
        %v394 = vld [vmem:[%s385 + $0x40] sm:$0xff]
        %v395 = vld [vmem:[%s385 + $0x48] sm:$0xff]
        %v396 = vld [vmem:[%s385 + $0x50] sm:$0xff]
        %v397 = vld [vmem:[%s385 + $0x58] sm:$0xff]
        %v398 = vld [vmem:[%s385 + $0x60] sm:$0xff]
        %v399 = vld [vmem:[%s385 + $0x68] sm:$0xff]
        %v400 = vld [vmem:[%s385 + $0x70] sm:$0xff]
        %v401 = vld [vmem:[%s385 + $0x78] sm:$0xff]
        %v402 = vld [vmem:[%s385 + $0x80] sm:$0xff]
        %v403 = vld [vmem:[%s385 + $0x88] sm:$0xff]
        %v404 = vld [vmem:[%s385 + $0x90] sm:$0xff]
        %v405 = vld [vmem:[%s385 + $0x98] sm:$0xff]
        %v406 = vperm.slane %v390, 0
        %v407 = vperm.slane %v395, 0
        %v408 = vperm.slane %v400, 0
        %v409 = vperm.slane %v405, 0
        %410 = vmatpush.msra.mxu0 0.0
        %411 = vmatpush.msra.mxu0 0.0
        %412 = vmatpush.msra.mxu0 0.0
        %413 = vmatpush.msra.mxu0 0.0
        %414 = vmatpush.msra.mxu0 0.0
        %415 = vmatpush.msra.mxu0 0.0
        %416 = vmatpush.msra.mxu0 0.0
        %417 = vmatpush.msra.mxu0 0.0
        %418 = vmatpush.msra.mxu0 0.0
        %419 = vmatpush.msra.mxu0 0.0
        %420 = vmatpush.msra.mxu0 0.0
        %421 = vmatpush.msra.mxu0 0.0
        %422 = vmatpush.msra.mxu0 %v389
        %423 = vmatpush.msra.mxu0 %v388
        %424 = vmatpush.msra.mxu0 %v387
        %425 = vmatpush.msra.mxu0 %v386
        %426 = vmatmul.f32.gmra.mxu0 %v303
        %v427 = vpop.f32.mrf.mxu0
        %v428 = vadd.f32 %v406, %v427
        %429 = vdwg.mxu0
        %430 = vmatpush.msra.mxu0 0.0
        %431 = vmatpush.msra.mxu0 0.0
        %432 = vmatpush.msra.mxu0 0.0
        %433 = vmatpush.msra.mxu0 0.0
        %434 = vmatpush.msra.mxu0 0.0
        %435 = vmatpush.msra.mxu0 0.0
        %436 = vmatpush.msra.mxu0 0.0
        %437 = vmatpush.msra.mxu0 0.0
        %438 = vmatpush.msra.mxu0 0.0
        %439 = vmatpush.msra.mxu0 0.0
        %440 = vmatpush.msra.mxu0 0.0
        %441 = vmatpush.msra.mxu0 0.0
        %442 = vmatpush.msra.mxu0 %v394
        %443 = vmatpush.msra.mxu0 %v393
        %444 = vmatpush.msra.mxu0 %v392
        %445 = vmatpush.msra.mxu0 %v391
        %446 = vmatmul.f32.gmra.mxu0 %v303
        %v447 = vpop.f32.mrf.mxu0
        %v448 = vadd.f32 %v407, %v447
        %449 = vdwg.mxu0
        %450 = vmatpush.msra.mxu0 0.0
        %451 = vmatpush.msra.mxu0 0.0
        %452 = vmatpush.msra.mxu0 0.0
        %453 = vmatpush.msra.mxu0 0.0
        %454 = vmatpush.msra.mxu0 0.0
        %455 = vmatpush.msra.mxu0 0.0
        %456 = vmatpush.msra.mxu0 0.0
        %457 = vmatpush.msra.mxu0 0.0
        %458 = vmatpush.msra.mxu0 0.0
        %459 = vmatpush.msra.mxu0 0.0
        %460 = vmatpush.msra.mxu0 0.0
        %461 = vmatpush.msra.mxu0 0.0
        %462 = vmatpush.msra.mxu0 %v399
        %463 = vmatpush.msra.mxu0 %v398
        %464 = vmatpush.msra.mxu0 %v397
        %465 = vmatpush.msra.mxu0 %v396
        %466 = vmatmul.f32.gmra.mxu0 %v303
        %v467 = vpop.f32.mrf.mxu0
        %v468 = vadd.f32 %v408, %v467
        %469 = vdwg.mxu0
        %470 = vmatpush.msra.mxu0 0.0
        %471 = vmatpush.msra.mxu0 0.0
        %472 = vmatpush.msra.mxu0 0.0
        %473 = vmatpush.msra.mxu0 0.0
        %474 = vmatpush.msra.mxu0 0.0
        %475 = vmatpush.msra.mxu0 0.0
        %476 = vmatpush.msra.mxu0 0.0
        %477 = vmatpush.msra.mxu0 0.0
        %478 = vmatpush.msra.mxu0 0.0
        %479 = vmatpush.msra.mxu0 0.0
        %480 = vmatpush.msra.mxu0 0.0
        %481 = vmatpush.msra.mxu0 0.0
        %482 = vmatpush.msra.mxu0 %v404
        %483 = vmatpush.msra.mxu0 %v403
        %484 = vmatpush.msra.mxu0 %v402
        %485 = vmatpush.msra.mxu0 %v401
        %486 = vmatmul.f32.gmra.mxu0 %v303
        %v487 = vpop.f32.mrf.mxu0
        %v488 = vadd.f32 %v409, %v487
        %489 = vdwg.mxu0
        %s490 = scalar_lea.vmem %s1, 320
        %v491 = vld [vmem:[%s490] sm:$0xff]
        %v492 = vld [vmem:[%s490 + $0x8] sm:$0xff]
        %v493 = vld [vmem:[%s490 + $0x10] sm:$0xff]
        %v494 = vld [vmem:[%s490 + $0x18] sm:$0xff]
        %v495 = vld [vmem:[%s490 + $0x20] sm:$0xff]
        %v496 = vld [vmem:[%s490 + $0x28] sm:$0xff]
        %v497 = vld [vmem:[%s490 + $0x30] sm:$0xff]
        %v498 = vld [vmem:[%s490 + $0x38] sm:$0xff]
        %v499 = vld [vmem:[%s490 + $0x40] sm:$0xff]
        %v500 = vld [vmem:[%s490 + $0x48] sm:$0xff]
        %v501 = vld [vmem:[%s490 + $0x50] sm:$0xff]
        %v502 = vld [vmem:[%s490 + $0x58] sm:$0xff]
        %v503 = vld [vmem:[%s490 + $0x60] sm:$0xff]
        %v504 = vld [vmem:[%s490 + $0x68] sm:$0xff]
        %v505 = vld [vmem:[%s490 + $0x70] sm:$0xff]
        %v506 = vld [vmem:[%s490 + $0x78] sm:$0xff]
        %v507 = vld [vmem:[%s490 + $0x80] sm:$0xff]
        %v508 = vld [vmem:[%s490 + $0x88] sm:$0xff]
        %v509 = vld [vmem:[%s490 + $0x90] sm:$0xff]
        %v510 = vld [vmem:[%s490 + $0x98] sm:$0xff]
        %v511 = vperm.slane %v495, 0
        %v512 = vperm.slane %v500, 0
        %v513 = vperm.slane %v505, 0
        %v514 = vperm.slane %v510, 0
        %515 = vmatpush.msra.mxu0 0.0
        %516 = vmatpush.msra.mxu0 0.0
        %517 = vmatpush.msra.mxu0 0.0
        %518 = vmatpush.msra.mxu0 0.0
        %519 = vmatpush.msra.mxu0 0.0
        %520 = vmatpush.msra.mxu0 0.0
        %521 = vmatpush.msra.mxu0 0.0
        %522 = vmatpush.msra.mxu0 0.0
        %523 = vmatpush.msra.mxu0 0.0
        %524 = vmatpush.msra.mxu0 0.0
        %525 = vmatpush.msra.mxu0 0.0
        %526 = vmatpush.msra.mxu0 0.0
        %527 = vmatpush.msra.mxu0 %v494
        %528 = vmatpush.msra.mxu0 %v493
        %529 = vmatpush.msra.mxu0 %v492
        %530 = vmatpush.msra.mxu0 %v491
        %531 = vmatmul.f32.gmra.mxu0 %v303
        %v532 = vpop.f32.mrf.mxu0
        %v533 = vadd.f32 %v511, %v532
        %534 = vdwg.mxu0
        %535 = vmatpush.msra.mxu0 0.0
        %536 = vmatpush.msra.mxu0 0.0
        %537 = vmatpush.msra.mxu0 0.0
        %538 = vmatpush.msra.mxu0 0.0
        %539 = vmatpush.msra.mxu0 0.0
        %540 = vmatpush.msra.mxu0 0.0
        %541 = vmatpush.msra.mxu0 0.0
        %542 = vmatpush.msra.mxu0 0.0
        %543 = vmatpush.msra.mxu0 0.0
        %544 = vmatpush.msra.mxu0 0.0
        %545 = vmatpush.msra.mxu0 0.0
        %546 = vmatpush.msra.mxu0 0.0
        %547 = vmatpush.msra.mxu0 %v499
        %548 = vmatpush.msra.mxu0 %v498
        %549 = vmatpush.msra.mxu0 %v497
        %550 = vmatpush.msra.mxu0 %v496
        %551 = vmatmul.f32.gmra.mxu0 %v303
        %v552 = vpop.f32.mrf.mxu0
        %v553 = vadd.f32 %v512, %v552
        %554 = vdwg.mxu0
        %555 = vmatpush.msra.mxu0 0.0
        %556 = vmatpush.msra.mxu0 0.0
        %557 = vmatpush.msra.mxu0 0.0
        %558 = vmatpush.msra.mxu0 0.0
        %559 = vmatpush.msra.mxu0 0.0
        %560 = vmatpush.msra.mxu0 0.0
        %561 = vmatpush.msra.mxu0 0.0
        %562 = vmatpush.msra.mxu0 0.0
        %563 = vmatpush.msra.mxu0 0.0
        %564 = vmatpush.msra.mxu0 0.0
        %565 = vmatpush.msra.mxu0 0.0
        %566 = vmatpush.msra.mxu0 0.0
        %567 = vmatpush.msra.mxu0 %v504
        %568 = vmatpush.msra.mxu0 %v503
        %569 = vmatpush.msra.mxu0 %v502
        %570 = vmatpush.msra.mxu0 %v501
        %571 = vmatmul.f32.gmra.mxu0 %v303
        %v572 = vpop.f32.mrf.mxu0
        %v573 = vadd.f32 %v513, %v572
        %574 = vdwg.mxu0
        %575 = vmatpush.msra.mxu0 0.0
        %576 = vmatpush.msra.mxu0 0.0
        %577 = vmatpush.msra.mxu0 0.0
        %578 = vmatpush.msra.mxu0 0.0
        %579 = vmatpush.msra.mxu0 0.0
        %580 = vmatpush.msra.mxu0 0.0
        %581 = vmatpush.msra.mxu0 0.0
        %582 = vmatpush.msra.mxu0 0.0
        %583 = vmatpush.msra.mxu0 0.0
        %584 = vmatpush.msra.mxu0 0.0
        %585 = vmatpush.msra.mxu0 0.0
        %586 = vmatpush.msra.mxu0 0.0
        %587 = vmatpush.msra.mxu0 %v509
        %588 = vmatpush.msra.mxu0 %v508
        %589 = vmatpush.msra.mxu0 %v507
        %590 = vmatpush.msra.mxu0 %v506
        %591 = vmatmul.f32.gmra.mxu0 %v303
        %v592 = vpop.f32.mrf.mxu0
        %v593 = vadd.f32 %v514, %v592
        %594 = vdwg.mxu0
        %vm595 = vcmask 64512
        %v597 = vsel %vm595, %v323, 0
        %v600 = vsel %vm595, %v428, 0
        %602 = vmatpush.xpose.msra.mxu0 0.0
        %603 = vmatpush.xpose.msra.mxu0 0.0
        %604 = vmatpush.xpose.msra.mxu0 0.0
        %605 = vmatpush.xpose.msra.mxu0 0.0
        %606 = vmatpush.xpose.msra.mxu0 0.0
        %607 = vmatpush.xpose.msra.mxu0 0.0
        %608 = vmatpush.xpose.msra.mxu0 0.0
        %609 = vmatpush.xpose.msra.mxu0 0.0
        %610 = vmatpush.xpose.msra.mxu0 0.0
        %611 = vmatpush.xpose.msra.mxu0 0.0
        %612 = vmatpush.xpose.msra.mxu0 0.0
        %613 = vmatpush.xpose.msra.mxu0 0.0
        %614 = vmatpush.xpose.msra.mxu0 0.0
        %615 = vmatpush.xpose.msra.mxu0 0.0
        %616 = vmatpush.xpose.msra.mxu0 0.0
        %617 = vmatpush.xpose.msra.mxu0 %v600
        %618 = vmatmul.f32.gmra.mxu0 %v597
        %v619 = vpop.f32.mrf.mxu0
        %v620 = vadd.f32 0.0, %v619
        %621 = vdwg.mxu0
        %v623 = vsel %vm595, %v343, 0
        %v626 = vsel %vm595, %v448, 0
        %628 = vmatpush.xpose.msra.mxu0 0.0
        %629 = vmatpush.xpose.msra.mxu0 0.0
        %630 = vmatpush.xpose.msra.mxu0 0.0
        %631 = vmatpush.xpose.msra.mxu0 0.0
        %632 = vmatpush.xpose.msra.mxu0 0.0
        %633 = vmatpush.xpose.msra.mxu0 0.0
        %634 = vmatpush.xpose.msra.mxu0 0.0
        %635 = vmatpush.xpose.msra.mxu0 0.0
        %636 = vmatpush.xpose.msra.mxu0 0.0
        %637 = vmatpush.xpose.msra.mxu0 0.0
        %638 = vmatpush.xpose.msra.mxu0 0.0
        %639 = vmatpush.xpose.msra.mxu0 0.0
        %640 = vmatpush.xpose.msra.mxu0 0.0
        %641 = vmatpush.xpose.msra.mxu0 0.0
        %642 = vmatpush.xpose.msra.mxu0 0.0
        %643 = vmatpush.xpose.msra.mxu0 %v626
        %644 = vmatmul.f32.gmra.mxu0 %v623
        %v645 = vpop.f32.mrf.mxu0
        %v646 = vadd.f32 0.0, %v645
        %647 = vdwg.mxu0
        %v649 = vsel %vm595, %v363, 0
        %v652 = vsel %vm595, %v468, 0
        %654 = vmatpush.xpose.msra.mxu0 0.0
        %655 = vmatpush.xpose.msra.mxu0 0.0
        %656 = vmatpush.xpose.msra.mxu0 0.0
        %657 = vmatpush.xpose.msra.mxu0 0.0
        %658 = vmatpush.xpose.msra.mxu0 0.0
        %659 = vmatpush.xpose.msra.mxu0 0.0
        %660 = vmatpush.xpose.msra.mxu0 0.0
        %661 = vmatpush.xpose.msra.mxu0 0.0
        %662 = vmatpush.xpose.msra.mxu0 0.0
        %663 = vmatpush.xpose.msra.mxu0 0.0
        %664 = vmatpush.xpose.msra.mxu0 0.0
        %665 = vmatpush.xpose.msra.mxu0 0.0
        %666 = vmatpush.xpose.msra.mxu0 0.0
        %667 = vmatpush.xpose.msra.mxu0 0.0
        %668 = vmatpush.xpose.msra.mxu0 0.0
        %669 = vmatpush.xpose.msra.mxu0 %v652
        %670 = vmatmul.f32.gmra.mxu0 %v649
        %v671 = vpop.f32.mrf.mxu0
        %v672 = vadd.f32 0.0, %v671
        %673 = vdwg.mxu0
        %v675 = vsel %vm595, %v383, 0
        %v678 = vsel %vm595, %v488, 0
        %680 = vmatpush.xpose.msra.mxu0 0.0
        %681 = vmatpush.xpose.msra.mxu0 0.0
        %682 = vmatpush.xpose.msra.mxu0 0.0
        %683 = vmatpush.xpose.msra.mxu0 0.0
        %684 = vmatpush.xpose.msra.mxu0 0.0
        %685 = vmatpush.xpose.msra.mxu0 0.0
        %686 = vmatpush.xpose.msra.mxu0 0.0
        %687 = vmatpush.xpose.msra.mxu0 0.0
        %688 = vmatpush.xpose.msra.mxu0 0.0
        %689 = vmatpush.xpose.msra.mxu0 0.0
        %690 = vmatpush.xpose.msra.mxu0 0.0
        %691 = vmatpush.xpose.msra.mxu0 0.0
        %692 = vmatpush.xpose.msra.mxu0 0.0
        %693 = vmatpush.xpose.msra.mxu0 0.0
        %694 = vmatpush.xpose.msra.mxu0 0.0
        %695 = vmatpush.xpose.msra.mxu0 %v678
        %696 = vmatmul.f32.gmra.mxu0 %v675
        %v697 = vpop.f32.mrf.mxu0
        %v698 = vadd.f32 0.0, %v697
        %699 = vdwg.mxu0
        %v700 = vmul.f32 %v620, 0.35355338
        %v701 = vmul.f32 %v646, 0.35355338
        %v702 = vmul.f32 %v672, 0.35355338
        %v703 = vmul.f32 %v698, 0.35355338
        %v704 = vperm.slane %v227, 0
        %v705 = vadd.f32 %v700, %v704
        %v706 = vadd.f32 %v701, %v704
        %v707 = vadd.f32 %v702, %v704
        %v708 = vadd.f32 %v703, %v704
        %v709 = vsel %vm595, %v705, -inf
        %710 = vmax.xlane.f32.xlu0 %v709
        %v711 = vpop.xlane.xlu0 %710
        %v712 = vsel %vm595, %v706, -inf
        %713 = vmax.xlane.f32.xlu0 %v712
        %v714 = vpop.xlane.xlu0 %713
        %v715 = vsel %vm595, %v707, -inf
        %716 = vmax.xlane.f32.xlu0 %v715
        %v717 = vpop.xlane.xlu0 %716
        %v718 = vsel %vm595, %v708, -inf
        %719 = vmax.xlane.f32.xlu0 %v718
        %v720 = vpop.xlane.xlu0 %719
        %v721 = vsub.f32 %v705, %v711
        %v722 = vsub.f32 %v706, %v714
        %v723 = vsub.f32 %v707, %v717
        %v724 = vsub.f32 %v708, %v720
        %v725 = vmul.f32 %v721, 1.442695
        %v726 = vpow.pop %v725
        %v727 = vmul.f32 %v722, 1.442695
        %v728 = vpow.pop %v727
        %v729 = vmul.f32 %v723, 1.442695
        %v730 = vpow.pop %v729
        %v731 = vmul.f32 %v724, 1.442695
        %v732 = vpow.pop %v731
        %v733 = vsel %vm595, %v726, 0.0
        %734 = vadd.xlane.f32.xlu0 %v733
        %v735 = vpop.xlane.xlu0 %734
        %v736 = vsel %vm595, %v728, 0.0
        %737 = vadd.xlane.f32.xlu0 %v736
        %v738 = vpop.xlane.xlu0 %737
        %v739 = vsel %vm595, %v730, 0.0
        %740 = vadd.xlane.f32.xlu0 %v739
        %v741 = vpop.xlane.xlu0 %740
        %v742 = vsel %vm595, %v732, 0.0
        %743 = vadd.xlane.f32.xlu0 %v742
        %v744 = vpop.xlane.xlu0 %743
        %v746 = vsel %vm595, %v726, 0
        %748 = vmatpush.msra.mxu0 0.0
        %749 = vmatpush.msra.mxu0 0.0
        %750 = vmatpush.msra.mxu0 0.0
        %751 = vmatpush.msra.mxu0 0.0
        %752 = vmatpush.msra.mxu0 0.0
        %753 = vmatpush.msra.mxu0 0.0
        %754 = vmatpush.msra.mxu0 0.0
        %755 = vmatpush.msra.mxu0 0.0
        %756 = vmatpush.msra.mxu0 0.0
        %757 = vmatpush.msra.mxu0 0.0
        %758 = vmatpush.msra.mxu0 0.0
        %759 = vmatpush.msra.mxu0 0.0
        %760 = vmatpush.msra.mxu0 0.0
        %761 = vmatpush.msra.mxu0 0.0
        %762 = vmatpush.msra.mxu0 0.0
        %763 = vmatpush.msra.mxu0 %v533
        %764 = vmatmul.f32.gmra.mxu0 %v746
        %v765 = vpop.f32.mrf.mxu0
        %v766 = vadd.f32 0.0, %v765
        %767 = vdwg.mxu0
        %v769 = vsel %vm595, %v728, 0
        %771 = vmatpush.msra.mxu0 0.0
        %772 = vmatpush.msra.mxu0 0.0
        %773 = vmatpush.msra.mxu0 0.0
        %774 = vmatpush.msra.mxu0 0.0
        %775 = vmatpush.msra.mxu0 0.0
        %776 = vmatpush.msra.mxu0 0.0
        %777 = vmatpush.msra.mxu0 0.0
        %778 = vmatpush.msra.mxu0 0.0
        %779 = vmatpush.msra.mxu0 0.0
        %780 = vmatpush.msra.mxu0 0.0
        %781 = vmatpush.msra.mxu0 0.0
        %782 = vmatpush.msra.mxu0 0.0
        %783 = vmatpush.msra.mxu0 0.0
        %784 = vmatpush.msra.mxu0 0.0
        %785 = vmatpush.msra.mxu0 0.0
        %786 = vmatpush.msra.mxu0 %v553
        %787 = vmatmul.f32.gmra.mxu0 %v769
        %v788 = vpop.f32.mrf.mxu0
        %v789 = vadd.f32 0.0, %v788
        %790 = vdwg.mxu0
        %v792 = vsel %vm595, %v730, 0
        %794 = vmatpush.msra.mxu0 0.0
        %795 = vmatpush.msra.mxu0 0.0
        %796 = vmatpush.msra.mxu0 0.0
        %797 = vmatpush.msra.mxu0 0.0
        %798 = vmatpush.msra.mxu0 0.0
        %799 = vmatpush.msra.mxu0 0.0
        %800 = vmatpush.msra.mxu0 0.0
        %801 = vmatpush.msra.mxu0 0.0
        %802 = vmatpush.msra.mxu0 0.0
        %803 = vmatpush.msra.mxu0 0.0
        %804 = vmatpush.msra.mxu0 0.0
        %805 = vmatpush.msra.mxu0 0.0
        %806 = vmatpush.msra.mxu0 0.0
        %807 = vmatpush.msra.mxu0 0.0
        %808 = vmatpush.msra.mxu0 0.0
        %809 = vmatpush.msra.mxu0 %v573
        %810 = vmatmul.f32.gmra.mxu0 %v792
        %v811 = vpop.f32.mrf.mxu0
        %v812 = vadd.f32 0.0, %v811
        %813 = vdwg.mxu0
        %v815 = vsel %vm595, %v732, 0
        %817 = vmatpush.msra.mxu0 0.0
        %818 = vmatpush.msra.mxu0 0.0
        %819 = vmatpush.msra.mxu0 0.0
        %820 = vmatpush.msra.mxu0 0.0
        %821 = vmatpush.msra.mxu0 0.0
        %822 = vmatpush.msra.mxu0 0.0
        %823 = vmatpush.msra.mxu0 0.0
        %824 = vmatpush.msra.mxu0 0.0
        %825 = vmatpush.msra.mxu0 0.0
        %826 = vmatpush.msra.mxu0 0.0
        %827 = vmatpush.msra.mxu0 0.0
        %828 = vmatpush.msra.mxu0 0.0
        %829 = vmatpush.msra.mxu0 0.0
        %830 = vmatpush.msra.mxu0 0.0
        %831 = vmatpush.msra.mxu0 0.0
        %832 = vmatpush.msra.mxu0 %v593
        %833 = vmatmul.f32.gmra.mxu0 %v815
        %v834 = vpop.f32.mrf.mxu0
        %v835 = vadd.f32 0.0, %v834
        %836 = vdwg.mxu0
        %v837 = vrcp.pop %v735
        %v838 = vrcp.pop %v738
        %v839 = vrcp.pop %v741
        %v840 = vrcp.pop %v744
        %v841 = vmul.f32 %v766, %v837
        %v842 = vmul.f32 %v789, %v838
        %v843 = vmul.f32 %v812, %v839
        %v844 = vmul.f32 %v835, %v840
        %v845 = vld [vmem:[%s2] sm:$0xff]
        %v846 = vld [vmem:[%s2 + $0x8] sm:$0xff]
        %v847 = vld [vmem:[%s2 + $0x10] sm:$0xff]
        %v848 = vld [vmem:[%s2 + $0x18] sm:$0xff]
        %v850 = vsel %vm595, %v841, 0
        %852 = vmatpush.msra.mxu0 0.0
        %853 = vmatpush.msra.mxu0 0.0
        %854 = vmatpush.msra.mxu0 0.0
        %855 = vmatpush.msra.mxu0 0.0
        %856 = vmatpush.msra.mxu0 0.0
        %857 = vmatpush.msra.mxu0 0.0
        %858 = vmatpush.msra.mxu0 0.0
        %859 = vmatpush.msra.mxu0 0.0
        %860 = vmatpush.msra.mxu0 0.0
        %861 = vmatpush.msra.mxu0 0.0
        %862 = vmatpush.msra.mxu0 0.0
        %863 = vmatpush.msra.mxu0 0.0
        %864 = vmatpush.msra.mxu0 0.0
        %865 = vmatpush.msra.mxu0 0.0
        %866 = vmatpush.msra.mxu0 0.0
        %867 = vmatpush.msra.mxu0 %v845
        %868 = vmatmul.f32.gmra.mxu0 %v850
        %v869 = vpop.f32.mrf.mxu0
        %v870 = vadd.f32 0.0, %v869
        %871 = vdwg.mxu0
        %v873 = vsel %vm595, %v842, 0
        %875 = vmatpush.msra.mxu0 0.0
        %876 = vmatpush.msra.mxu0 0.0
        %877 = vmatpush.msra.mxu0 0.0
        %878 = vmatpush.msra.mxu0 0.0
        %879 = vmatpush.msra.mxu0 0.0
        %880 = vmatpush.msra.mxu0 0.0
        %881 = vmatpush.msra.mxu0 0.0
        %882 = vmatpush.msra.mxu0 0.0
        %883 = vmatpush.msra.mxu0 0.0
        %884 = vmatpush.msra.mxu0 0.0
        %885 = vmatpush.msra.mxu0 0.0
        %886 = vmatpush.msra.mxu0 0.0
        %887 = vmatpush.msra.mxu0 0.0
        %888 = vmatpush.msra.mxu0 0.0
        %889 = vmatpush.msra.mxu0 0.0
        %890 = vmatpush.msra.mxu0 %v846
        %891 = vmatmul.f32.gmra.mxu0 %v873
        %v892 = vpop.f32.mrf.mxu0
        %v893 = vadd.f32 0.0, %v892
        %894 = vdwg.mxu0
        %v896 = vsel %vm595, %v843, 0
        %898 = vmatpush.msra.mxu0 0.0
        %899 = vmatpush.msra.mxu0 0.0
        %900 = vmatpush.msra.mxu0 0.0
        %901 = vmatpush.msra.mxu0 0.0
        %902 = vmatpush.msra.mxu0 0.0
        %903 = vmatpush.msra.mxu0 0.0
        %904 = vmatpush.msra.mxu0 0.0
        %905 = vmatpush.msra.mxu0 0.0
        %906 = vmatpush.msra.mxu0 0.0
        %907 = vmatpush.msra.mxu0 0.0
        %908 = vmatpush.msra.mxu0 0.0
        %909 = vmatpush.msra.mxu0 0.0
        %910 = vmatpush.msra.mxu0 0.0
        %911 = vmatpush.msra.mxu0 0.0
        %912 = vmatpush.msra.mxu0 0.0
        %913 = vmatpush.msra.mxu0 %v847
        %914 = vmatmul.f32.gmra.mxu0 %v896
        %v915 = vpop.f32.mrf.mxu0
        %v916 = vadd.f32 0.0, %v915
        %917 = vdwg.mxu0
        %v919 = vsel %vm595, %v844, 0
        %921 = vmatpush.msra.mxu0 0.0
        %922 = vmatpush.msra.mxu0 0.0
        %923 = vmatpush.msra.mxu0 0.0
        %924 = vmatpush.msra.mxu0 0.0
        %925 = vmatpush.msra.mxu0 0.0
        %926 = vmatpush.msra.mxu0 0.0
        %927 = vmatpush.msra.mxu0 0.0
        %928 = vmatpush.msra.mxu0 0.0
        %929 = vmatpush.msra.mxu0 0.0
        %930 = vmatpush.msra.mxu0 0.0
        %931 = vmatpush.msra.mxu0 0.0
        %932 = vmatpush.msra.mxu0 0.0
        %933 = vmatpush.msra.mxu0 0.0
        %934 = vmatpush.msra.mxu0 0.0
        %935 = vmatpush.msra.mxu0 0.0
        %936 = vmatpush.msra.mxu0 %v848
        %937 = vmatmul.f32.gmra.mxu0 %v919
        %v938 = vpop.f32.mrf.mxu0
        %v939 = vadd.f32 0.0, %v938
        %940 = vdwg.mxu0
        %v941 = vsel %vm228, %v870, 0.0
        %v942 = vsel %vm228, %v893, 0.0
        %v943 = vadd.f32 %v941, %v942
        %v944 = vsel %vm228, %v916, 0.0
        %v945 = vadd.f32 %v943, %v944
        %v946 = vsel %vm228, %v939, 0.0
        %v947 = vadd.f32 %v945, %v946
        %v948 = vperm.slane %v225, 2
        %v949 = vadd.f32 %v947, %v948
        %v950 = vadd.f32 %v223, %v949
        %v951 = vsel %vm228, %v950, 0.0
        %952 = vadd.xlane.f32.xlu0 %v951
        %v953 = vpop.xlane.xlu0 %952
        %v954 = vmul.f32 %v953, %v238
        %v955 = vsub.f32 %v950, %v954
        %v956 = vmul.f32 %v955, %v955
        %v957 = vsel %vm228, %v956, 0.0
        %958 = vadd.xlane.f32.xlu0 %v957
        %v959 = vpop.xlane.xlu0 %958
        %v960 = vmul.f32 %v959, 0.032258064
        %v961 = vrsqrt.pop %v960
        %v962 = vmul.f32 %v961, %v960
        %v963 = vmul.f32 %v962, %v961
        %v964 = vmul.f32 0.5, %v963
        %v965 = vsub.f32 1.5, %v964
        %v966 = vmul.f32 %v961, %v965
        %v967 = vmul.f32 %v960, %v966
        %vm968 = vcmp.eq.f32.partialorder %v960, inf
        %v969 = vsel %vm968, %v960, %v967
        %vm970 = vcmp.eq.f32.partialorder %v960, 0.0
        %v971 = vand.u32 %v960, 2147483648
        %v972 = vsel %vm970, %v971, %v969
        %v973 = vperm.slane %v225, 3
        %v974 = vmul.f32 %v973, %v955
        %v975 = vadd.f32 %v972, 1e-06
        %v976 = vrcp.pop %v975
        %v977 = vmul.f32 %v975, %v976
        %v978 = vsub.f32 1.0, %v977
        %v979 = vmul.f32 %v976, %v978
        %v980 = vadd.f32 %v976, %v979
        %vm981 = vweird.f32 %v975
        %vm982 = vweird.f32 %v976
        %vm983 = vmor %vm981, %vm982
        %v984 = vsel %vm983, %v976, %v980
        %v985 = vand.u32 2147483647, %v975
        %vm986 = vcmp.eq.f32.partialorder %v985, 8.507059e+37
        %v987 = vand.u32 %v975, 2147483648
        %v988 = vor.u32 1.1754944e-38, %v987
        %v989 = vsel %vm986, %v988, %v984
        %v990 = vmul.f32 %v974, %v989
        %v991 = vperm.slane %v225, 4
        %v992 = vadd.f32 %v990, %v991
        %v993 = vld [vmem:[%s3] sm:$0xff]
        %v994 = vld [vmem:[%s3 + $0x8] sm:$0xff]
        %v995 = vld [vmem:[%s3 + $0x10] sm:$0xff]
        %v996 = vld [vmem:[%s3 + $0x18] sm:$0xff]
        %v997 = vld [vmem:[%s3 + $0x20] sm:$0xff]
        %v998 = vld [vmem:[%s3 + $0x28] sm:$0xff]
        %v999 = vld [vmem:[%s3 + $0x30] sm:$0xff]
        %v1000 = vld [vmem:[%s3 + $0x38] sm:$0xff]
        %v1001 = vld [vmem:[%s3 + $0x40] sm:$0xff]
        %v1002 = vld [vmem:[%s3 + $0x48] sm:$0xff]
        %v1003 = vld [vmem:[%s3 + $0x50] sm:$0xff]
        %v1004 = vld [vmem:[%s3 + $0x58] sm:$0xff]
        %v1005 = vperm.slane %v225, 5
        %v1007 = vsel %vm228, %v992, 0
        %1009 = vmatpush.msra.mxu0 0.0
        %1010 = vmatpush.msra.mxu0 0.0
        %1011 = vmatpush.msra.mxu0 0.0
        %1012 = vmatpush.msra.mxu0 0.0
        %1013 = vmatpush.msra.mxu0 0.0
        %1014 = vmatpush.msra.mxu0 0.0
        %1015 = vmatpush.msra.mxu0 0.0
        %1016 = vmatpush.msra.mxu0 0.0
        %1017 = vmatpush.msra.mxu0 0.0
        %1018 = vmatpush.msra.mxu0 0.0
        %1019 = vmatpush.msra.mxu0 0.0
        %1020 = vmatpush.msra.mxu0 0.0
        %1021 = vmatpush.msra.mxu0 %v996
        %1022 = vmatpush.msra.mxu0 %v995
        %1023 = vmatpush.msra.mxu0 %v994
        %1024 = vmatpush.msra.mxu0 %v993
        %1025 = vmatmul.f32.gmra.mxu0 %v1007
        %v1026 = vpop.f32.mrf.mxu0
        %v1027 = vadd.f32 %v1005, %v1026
        %1028 = vdwg.mxu0
        %v1029 = vmax.f32 %v1027, 0.0
        %v1030 = vperm.slane %v225, 6
        %vm1031 = vcmask 523264
        %v1033 = vsel %vm1031, %v1029, 0
        %1035 = vmatpush.msra.mxu0 0.0
        %1036 = vmatpush.msra.mxu0 0.0
        %1037 = vmatpush.msra.mxu0 0.0
        %1038 = vmatpush.msra.mxu0 0.0
        %1039 = vmatpush.msra.mxu0 0.0
        %1040 = vmatpush.msra.mxu0 0.0
        %1041 = vmatpush.msra.mxu0 0.0
        %1042 = vmatpush.msra.mxu0 0.0
        %1043 = vmatpush.msra.mxu0 %v1004
        %1044 = vmatpush.msra.mxu0 %v1003
        %1045 = vmatpush.msra.mxu0 %v1002
        %1046 = vmatpush.msra.mxu0 %v1001
        %1047 = vmatpush.msra.mxu0 %v1000
        %1048 = vmatpush.msra.mxu0 %v999
        %1049 = vmatpush.msra.mxu0 %v998
        %1050 = vmatpush.msra.mxu0 %v997
        %1051 = vmatmul.f32.gmra.mxu0 %v1033
        %v1052 = vpop.f32.mrf.mxu0
        %v1053 = vadd.f32 %v1030, %v1052
        %1054 = vdwg.mxu0
        %v1055 = vadd.f32 %v950, %v1053
        %1056 = vst.msk [vmem:[%s217] sm:$0xff] %vm228, %v1055
        %s1057 = sand.u32 %s137, 1
        %s1058 = scalar_lea.sflag [#allocation3], %s1057
        %s1059 = sand.u32 %s137, 1
        %s1060 = smul.addr %s1059, 8
        %s1061 = scalar_lea.vmem [#allocation2], %s1060
        // Predicated region
        $region41: #{tpu_custom_call.1} parent=39 // pred_check
          %p1062 = pneg %p147
        $region42: #{tpu_custom_call.1} parent=39 // pred_check_branch
          %1064 = sbr.rel (%p1062) target = $region44
        $region43: #{tpu_custom_call.1} parent=39 // pred_region
          %1066 = vsyncadd %s1058, 0
          %s1067 = smul.addr %s19, 8
          %s1068 = scalar_lea.hbm %s5, %s1067
          %s1070 = sshll.u32 %s1061, 4
          %s1071 = int_to_ptr.vmem [resolvable:$true] %s1070
          %s1072 = sshll.u32 %s1068, 4
          %s1073 = int_to_ptr.hbm [resolvable:$true] %s1072
          %1075 = dma.vmem_to_hbm [thread:$0]  %s1071, 128, %s1073, %s1058
        $region44: #{tpu_custom_call.1} parent=39 // pred_fallthru
          _
      $region40: #{tpu_custom_call.1} parent=5 // pred_fallthru
        _
      %p1076 = scmp.le.s32.totalorder 2, %s14
      // Predicated region
      $region45: #{tpu_custom_call.1} parent=5 // pred_check
        %p1077 = pneg %p1076
      $region46: #{tpu_custom_call.1} parent=5 // pred_check_branch
        %1079 = sbr.rel (%p1077) target = $region48
      $region47: #{tpu_custom_call.1} parent=5 // pred_region
        %s1080 = ssub.s32 %s14, 2
        // Predicated region
        $region49: #{tpu_custom_call.1} parent=47 // pred_check
          %p1081 = pneg %p153
        $region50: #{tpu_custom_call.1} parent=47 // pred_check_branch
          %1083 = sbr.rel (%p1081) target = $region52
        $region51: #{tpu_custom_call.1} parent=47 // pred_region
          %s1084 = sand.u32 %s138, 1
          %s1085 = scalar_lea.sflag [#allocation3], %s1084
          %s1086 = sand.u32 %s138, 1
          %s1087 = smul.addr %s1086, 8
          %s1088 = scalar_lea.vmem [#allocation2], %s1087
          %1090 = dma.done %s1085, 128
        $region52: #{tpu_custom_call.1} parent=47 // pred_fallthru
          _
      $region48: #{tpu_custom_call.1} parent=5 // pred_fallthru
        _
    $region6: #{tpu_custom_call.1} parent=1 // loop_footer
      %s18 = sadd.s32 1, %s14
    $region7: #{tpu_custom_call.1} parent=1 // loop_footer_branch
      %13 = sbr.rel target = $region3
    $region8: #{tpu_custom_call.1} parent=1 // loop_exit
      _
    %1091 = vsyncpa [#allocation3], 1
    %s1092 = scalar_lea.sflag [#allocation3], 1
    %1093 = vsyncpa %s1092, 1

</llo_original>
